<compile_context>
chip_gen: v7x
topology: tpu7x:2x2x1
jax: 0.10.0
libtpu: 0.0.40
codegen_flags: <defaults>
</compile_context>

<pallas_src>
import jax
import jax.numpy as jnp
from jax.experimental import pallas as pl
from jax.experimental.pallas import tpu as pltpu

_MIB = 1024 * 1024

# Per-generation defaults: (tm, ti, vmem_limit_bytes).
_TUNING = {
    "v5e": (512, 512, 100 * _MIB),
    "v6e": (1024, 512, 104 * _MIB),
    "v7x": (512, 256, 48 * _MIB),   # leave headroom under the 64 MiB per-TC VMEM
    None:  (512, 512, 64 * _MIB),
}


def _tpu_generation():
    try:
        kind = jax.devices()[0].device_kind.lower()
    except Exception:
        return None
    if "v7" in kind:
        return "v7x"
    if "v6" in kind:
        return "v6e"
    if "v5 lite" in kind or "v5e" in kind or "v5litepod" in kind:
        return "v5e"
    return None


def _pick_intermediate_tile(I, target):
    """Largest divisor of I that is a multiple of 128 (lane dense) and <= target."""
    target = max(128, target - target % 128)
    for cand in range(target, 0, -128):
        if I % cand == 0:
            return cand
    return I  # no lane-aligned divisor: fall back to one full-width tile


def qwen2_mlp_kernel(x_ref, gw_ref, uw_ref, dw_ref, o_ref, acc_ref):
    """One grid step (m-tile, i-tile).

    x_ref:  (TM, H)       activation tile (re-used across the whole i axis)
    gw_ref: (H, TI)       gate_proj weight tile
    uw_ref: (H, TI)       up_proj weight tile
    dw_ref: (TI, H)       down_proj weight tile
    o_ref:  (TM, H)       output tile (resident across the i axis)
    acc_ref:(TM, H) f32   scratch accumulator
    """
    k = pl.program_id(1)

    @pl.when(k == 0)
    def _():
        acc_ref[...] = jnp.zeros_like(acc_ref)

    x = x_ref[...]
    g = jnp.dot(x, gw_ref[...], preferred_element_type=jnp.float32)
    u = jnp.dot(x, uw_ref[...], preferred_element_type=jnp.float32)
    # SiLU (Qwen2's hidden_act): g * sigmoid(g), then elementwise gate with up.
    h = (g * jax.nn.sigmoid(g)) * u
    acc_ref[...] += jnp.dot(h.astype(dw_ref.dtype), dw_ref[...],
                            preferred_element_type=jnp.float32)

    @pl.when(k == pl.num_programs(1) - 1)
    def _():
        o_ref[...] = acc_ref[...].astype(o_ref.dtype)


def qwen2_mlp(x, gate_w, up_w, down_w, *, tm=None, ti=None,
              param_dtype=jnp.bfloat16, out_dtype=None,
              vmem_limit_bytes=None, weight_buffers=None):
    """x: (M, H).  gate_w/up_w: (H, I).  down_w: (I, H).

    Weights/activations are streamed in `param_dtype` (default bf16; pass weights
    already in bf16 to avoid a per-call cast), matmuls accumulate in f32, and the
    output is emitted in `out_dtype` (default = param_dtype).
    tm/ti/vmem_limit_bytes default per detected TPU generation (see _TUNING).
    weight_buffers=3 deepens the weight-stream pipeline (decode path, v5e/v6e).
    """
    M, H = x.shape
    I = gate_w.shape[1]
    assert gate_w.shape == (H, I) and up_w.shape == (H, I) and down_w.shape == (I, H)

    gen = _tpu_generation()
    d_tm, d_ti, d_vmem = _TUNING.get(gen, _TUNING[None])
    tm = d_tm if tm is None else tm
    ti = d_ti if ti is None else ti
    vmem_limit_bytes = d_vmem if vmem_limit_bytes is None else vmem_limit_bytes
    out_dtype = param_dtype if out_dtype is None else out_dtype

    # Lane-dense intermediate tile that divides I (handles I=8960 etc.).
    ti = _pick_intermediate_tile(I, ti)
    n_i = I // ti

    # Token-dimension tiling.
    if M <= tm:
        if gen == "v7x" and M >= 16:
            # Single m tile would idle one of v7x's two TensorCores: split in two.
            m_pad = pl.cdiv(M, 16) * 16
            tm = m_pad // 2
        else:
            tm = M
            m_pad = M
    else:
        m_pad = pl.cdiv(M, tm) * tm
    x_p = x if m_pad == M else jnp.pad(x, ((0, m_pad - M), (0, 0)))

    # Stream in param_dtype (no-op casts if inputs are already in that dtype).
    x_p = x_p.astype(param_dtype)
    gate_w = gate_w.astype(param_dtype)
    up_w = up_w.astype(param_dtype)
    down_w = down_w.astype(param_dtype)

    def w_spec(shape, index_map):
        if weight_buffers is None:
            return pl.BlockSpec(shape, index_map)
        return pl.BlockSpec(shape, index_map,
                            pipeline_mode=pl.Buffered(weight_buffers))

    grid = (m_pad // tm, n_i)

    # TODO(synk): decode is weight-BW-bound; stream int8 weights (v5e/v6e) or fp8
    #             (v7x) with per-tile f32 scales for ~2x decode throughput.
    # TODO(synk): for decode on v7x, shard the k axis across the two TensorCores
    #             (core_map + partial accumulators + cross-core add) instead of
    #             splitting M, to avoid re-streaming the weights per core.
    out = pl.pallas_call(
        qwen2_mlp_kernel,
        out_shape=jax.ShapeDtypeStruct((m_pad, H), out_dtype),
        grid_spec=pltpu.PrefetchScalarGridSpec(
            num_scalar_prefetch=0,
            grid=grid,
            in_specs=[
                pl.BlockSpec((tm, H), lambda m, k: (m, 0)),  # x tile (constant over k)
                w_spec((H, ti), lambda m, k: (0, k)),        # gate_proj weight tile
                w_spec((H, ti), lambda m, k: (0, k)),        # up_proj weight tile
                w_spec((ti, H), lambda m, k: (k, 0)),        # down_proj weight tile
            ],
            out_specs=pl.BlockSpec((tm, H), lambda m, k: (m, 0)),
            scratch_shapes=[pltpu.VMEM((tm, H), jnp.float32)],
        ),
        compiler_params=pltpu.CompilerParams(
            dimension_semantics=("parallel", "arbitrary"),
            vmem_limit_bytes=vmem_limit_bytes,
        ),
    )(x_p, gate_w, up_w, down_w)

    return out[:M]


def qwen2_mlp_ref(x, gate_w, up_w, down_w, param_dtype=jnp.bfloat16, out_dtype=None):
    """f32-math reference mirroring the kernel's bf16 streaming dtype flow."""
    out_dtype = param_dtype if out_dtype is None else out_dtype
    f32 = jnp.float32
    xb = x.astype(param_dtype).astype(f32)
    gw = gate_w.astype(param_dtype).astype(f32)
    uw = up_w.astype(param_dtype).astype(f32)
    dw = down_w.astype(param_dtype).astype(f32)
    g = xb @ gw
    u = xb @ uw
    h = (jax.nn.silu(g) * u).astype(param_dtype).astype(f32)
    return (h @ dw).astype(out_dtype)


if __name__ == "__main__":
    # Small config: hidden_size=128, intermediate_size=256, batch=2, seq=8
    batch, seq = 2, 8
    hidden_size, intermediate_size = 128, 256

    key = jax.random.PRNGKey(0)
    k_x, k_g, k_u, k_d = jax.random.split(key, 4)

    hidden_state = jax.random.normal(k_x, (batch, seq, hidden_size), dtype=jnp.float32)

    # PyTorch nn.Linear(in, out, bias=False) weight has shape (out, in).
    gate_w_pt = jax.random.normal(k_g, (intermediate_size, hidden_size), jnp.float32) * 0.02
    up_w_pt   = jax.random.normal(k_u, (intermediate_size, hidden_size), jnp.float32) * 0.02
    down_w_pt = jax.random.normal(k_d, (hidden_size, intermediate_size), jnp.float32) * 0.02

    # Transpose to (in, out) so the kernel does x @ W directly.
    gate_w = gate_w_pt.T
    up_w = up_w_pt.T
    down_w = down_w_pt.T

    # Flatten (batch, seq, hidden) -> (tokens, hidden) for the kernel hot path.
    x2d = hidden_state.reshape(batch * seq, hidden_size)

    out2d = qwen2_mlp(x2d, gate_w, up_w, down_w)
    out = out2d.reshape(batch, seq, hidden_size)
    jax.block_until_ready(out)

    ref = qwen2_mlp_ref(x2d, gate_w, up_w, down_w).reshape(batch, seq, hidden_size)
    assert jnp.allclose(out.astype(jnp.float32), ref.astype(jnp.float32),
                        atol=2e-2, rtol=2e-2), "mismatch vs reference"

    print("KERNEL_OK")
</pallas_src>

<mosaic_0001>
module attributes {stable_mosaic.version = 11 : i64} {
  func.func @qwen2_mlp_kernel(%arg0: i32, %arg1: i32, %arg2: memref<16x128xbf16, #tpu.memory_space<vmem>>, %arg3: memref<128x256xbf16, #tpu.memory_space<vmem>>, %arg4: memref<128x256xbf16, #tpu.memory_space<vmem>>, %arg5: memref<256x128xbf16, #tpu.memory_space<vmem>>, %arg6: memref<16x128xbf16, #tpu.memory_space<vmem>>, %arg7: memref<16x128xf32, #tpu.memory_space<vmem>>) attributes {dimension_semantics = [#tpu.dimension_semantics<parallel>, #tpu.dimension_semantics<arbitrary>], iteration_bounds = array<i64: 1, 1>, scalar_prefetch = 0 : i64, scratch_operands = 1 : i64, tpu.core_type = #tpu.core_type<tc>, window_params = [{transform_indices = @transform_0, window_bounds = array<i64: 16, 128>}, {transform_indices = @transform_1, window_bounds = array<i64: 128, 256>}, {transform_indices = @transform_2, window_bounds = array<i64: 128, 256>}, {transform_indices = @transform_3, window_bounds = array<i64: 256, 128>}, {transform_indices = @transform_4, window_bounds = array<i64: 16, 128>}]} {
    %c0_i32 = arith.constant 0 : i32
    %0 = arith.cmpi eq, %arg1, %c0_i32 : i32
    %1 = arith.extui %0 : i1 to i32
    %c0_i32_0 = arith.constant 0 : i32
    %2 = arith.cmpi ne, %1, %c0_i32_0 : i32
    scf.if %2 {
      %cst_17 = arith.constant 0.000000e+00 : f32
      %24 = vector.broadcast %cst_17 : f32 to vector<16x128xf32>
      %c0_18 = arith.constant 0 : index
      %c0_19 = arith.constant 0 : index
      %25 = vector.load %arg7[%c0_18, %c0_19] : memref<16x128xf32, #tpu.memory_space<vmem>>, vector<16x128xf32>
      tpu.vector_store %arg7[%c0_18, %c0_19], %24 {strides = array<i32>} : memref<16x128xf32, #tpu.memory_space<vmem>>, vector<16x128xf32>,
    } else {
    }
    %c0 = arith.constant 0 : index
    %c0_1 = arith.constant 0 : index
    %3 = vector.load %arg2[%c0, %c0_1] : memref<16x128xbf16, #tpu.memory_space<vmem>>, vector<16x128xbf16>
    %c0_2 = arith.constant 0 : index
    %c0_3 = arith.constant 0 : index
    %4 = vector.load %arg3[%c0_2, %c0_3] : memref<128x256xbf16, #tpu.memory_space<vmem>>, vector<128x256xbf16>
    %cst = arith.constant dense<0.000000e+00> : vector<16x256xf32>
    %5 = tpu.matmul %3, %4, %cst {dimension_numbers = #tpu.dot_dimension_numbers<[1], [0], [0], [1], [0, 0, 1, 1], [], []>} : vector<16x128xbf16>, vector<128x256xbf16>, vector<16x256xf32> -> vector<16x256xf32>
    %c0_4 = arith.constant 0 : index
    %c0_5 = arith.constant 0 : index
    %6 = vector.load %arg4[%c0_4, %c0_5] : memref<128x256xbf16, #tpu.memory_space<vmem>>, vector<128x256xbf16>
    %cst_6 = arith.constant dense<0.000000e+00> : vector<16x256xf32>
    %7 = tpu.matmul %3, %6, %cst_6 {dimension_numbers = #tpu.dot_dimension_numbers<[1], [0], [0], [1], [0, 0, 1, 1], [], []>} : vector<16x128xbf16>, vector<128x256xbf16>, vector<16x256xf32> -> vector<16x256xf32>
    %8 = arith.negf %5 : vector<16x256xf32>
    %9 = math.exp %8 : vector<16x256xf32>
    %cst_7 = arith.constant 1.000000e+00 : f32
    %10 = vector.broadcast %cst_7 : f32 to vector<16x256xf32>
    %11 = arith.addf %10, %9 : vector<16x256xf32>
    %12 = arith.divf %10, %11 : vector<16x256xf32>
    %13 = arith.mulf %5, %12 : vector<16x256xf32>
    %14 = arith.mulf %13, %7 : vector<16x256xf32>
    %c0_8 = arith.constant 0 : index
    %c0_9 = arith.constant 0 : index
    %15 = vector.load %arg7[%c0_8, %c0_9] : memref<16x128xf32, #tpu.memory_space<vmem>>, vector<16x128xf32>
    %16 = arith.truncf %14 : vector<16x256xf32> to vector<16x256xbf16>
    %c0_10 = arith.constant 0 : index
    %c0_11 = arith.constant 0 : index
    %17 = vector.load %arg5[%c0_10, %c0_11] : memref<256x128xbf16, #tpu.memory_space<vmem>>, vector<256x128xbf16>
    %cst_12 = arith.constant dense<0.000000e+00> : vector<16x128xf32>
    %18 = tpu.matmul %16, %17, %cst_12 {dimension_numbers = #tpu.dot_dimension_numbers<[1], [0], [0], [1], [0, 0, 1, 1], [], []>} : vector<16x256xbf16>, vector<256x128xbf16>, vector<16x128xf32> -> vector<16x128xf32>
    %19 = arith.addf %15, %18 : vector<16x128xf32>
    %c0_13 = arith.constant 0 : index
    %c0_14 = arith.constant 0 : index
    %20 = vector.load %arg7[%c0_13, %c0_14] : memref<16x128xf32, #tpu.memory_space<vmem>>, vector<16x128xf32>
    tpu.vector_store %arg7[%c0_13, %c0_14], %19 {strides = array<i32>} : memref<16x128xf32, #tpu.memory_space<vmem>>, vector<16x128xf32>,
    %c0_i32_15 = arith.constant 0 : i32
    %21 = arith.cmpi eq, %arg1, %c0_i32_15 : i32
    %22 = arith.extui %21 : i1 to i32
    %c0_i32_16 = arith.constant 0 : i32
    %23 = arith.cmpi ne, %22, %c0_i32_16 : i32
    scf.if %23 {
      %c0_17 = arith.constant 0 : index
      %c0_18 = arith.constant 0 : index
      %24 = vector.load %arg7[%c0_17, %c0_18] : memref<16x128xf32, #tpu.memory_space<vmem>>, vector<16x128xf32>
      %25 = arith.truncf %24 : vector<16x128xf32> to vector<16x128xbf16>
      %c0_19 = arith.constant 0 : index
      %c0_20 = arith.constant 0 : index
      %26 = vector.load %arg6[%c0_19, %c0_20] : memref<16x128xbf16, #tpu.memory_space<vmem>>, vector<16x128xbf16>
      tpu.vector_store %arg6[%c0_19, %c0_20], %25 {strides = array<i32>} : memref<16x128xbf16, #tpu.memory_space<vmem>>, vector<16x128xbf16>,
    } else {
    }
    return
  }
  func.func @transform_0(%arg0: i32, %arg1: i32) -> (i32, i32) {
    %c0_i32 = arith.constant 0 : i32
    %c0_i32_0 = arith.constant 0 : i32
    return %arg0, %c0_i32 : i32, i32
  }
  func.func @transform_1(%arg0: i32, %arg1: i32) -> (i32, i32) {
    %c0_i32 = arith.constant 0 : i32
    %c0_i32_0 = arith.constant 0 : i32
    return %c0_i32, %arg1 : i32, i32
  }
  func.func @transform_2(%arg0: i32, %arg1: i32) -> (i32, i32) {
    %c0_i32 = arith.constant 0 : i32
    %c0_i32_0 = arith.constant 0 : i32
    return %c0_i32, %arg1 : i32, i32
  }
  func.func @transform_3(%arg0: i32, %arg1: i32) -> (i32, i32) {
    %c0_i32 = arith.constant 0 : i32
    %c0_i32_0 = arith.constant 0 : i32
    return %arg1, %c0_i32 : i32, i32
  }
  func.func @transform_4(%arg0: i32, %arg1: i32) -> (i32, i32) {
    %c0_i32 = arith.constant 0 : i32
    %c0_i32_0 = arith.constant 0 : i32
    return %arg0, %c0_i32 : i32, i32
  }
}

</mosaic_0001>

<llo_original>
// kernel: tpu_custom_call.1
$region0: #{tpu_custom_call.1}
  #allocation0 [shape = 'u32[]', space=smem, size = 0x4, offset = 0x4, fixed_abs, tag = 'smem constant byte address 0x4 - core index']
  #allocation1 [shape = 'u32[144,128]{1,0:T(1,128)}', space=vmem, size = 0x12000, scoped, tag = 'internal scratch']
  #allocation2 [shape = 'f32[16,128]{1,0:T(8,128)}', space=vmem, size = 0x2000, scoped, tag = 'scratch operand']
  %s0 = inlined_call_operand.hbm [shape: bf16[16,128], index: 0, kind: input, shape index: {}]
  %s1 = inlined_call_operand.hbm [shape: bf16[128,256], index: 1, kind: input, shape index: {}]
  %s2 = inlined_call_operand.hbm [shape: bf16[128,256], index: 2, kind: input, shape index: {}]
  %s3 = inlined_call_operand.hbm [shape: bf16[256,128], index: 3, kind: input, shape index: {}]
  %s4 = inlined_call_operand.hbm [shape: bf16[16,128], index: 4, kind: output, shape index: {}]
  %s5 = sld [smem:[#allocation0]]
  $region50: #{tpu_custom_call.1} parent=0
    _
  %s7 = ssub.s32 1, %s5
  %s8 = scalar_select 0, %s7, %s5
  $region1: #{tpu_custom_call.1} parent=0
    #allocation3 [shape = 'u8[4096]{0}', space=vmem, size = 0x1000, scoped, tag = 'input window, operand 0, single buffered']
    #allocation4 [shape = 's32[1]{0}', space=sflag, size = 0x4, scoped, tag = 'scoped memory for tpu_custom_call.1']
    #allocation5 [shape = 's32[1]{0}', space=sflag, size = 0x4, scoped, tag = 'scoped memory for tpu_custom_call.1']
    #allocation6 [shape = 'u8[65536]{0}', space=vmem, size = 0x10000, scoped, tag = 'input window, operand 1, single buffered']
    #allocation7 [shape = 's32[1]{0}', space=sflag, size = 0x4, scoped, tag = 'scoped memory for tpu_custom_call.1']
    #allocation8 [shape = 'u8[65536]{0}', space=vmem, size = 0x10000, scoped, tag = 'input window, operand 2, single buffered']
    #allocation9 [shape = 'u8[65536]{0}', space=vmem, size = 0x10000, scoped, tag = 'input window, operand 3, single buffered']
    #allocation10 [shape = 's32[1]{0}', space=sflag, size = 0x4, scoped, tag = 'scoped memory for tpu_custom_call.1']
    #allocation11 [shape = 'u8[4096]{0}', space=vmem, size = 0x1000, scoped, tag = 'output window, operand 0, single buffered']
    %9 = vsyncpa [#allocation4], 0
    %10 = vsyncpa [#allocation7], 0
    %11 = vsyncpa [#allocation10], 0
    %12 = vsyncpa [#allocation5], 0
    // Predicated region
    $region2: #{tpu_custom_call.1} parent=1 // pred_check
      _
    $region3: #{tpu_custom_call.1} parent=1 // pred_check_branch
      %14 = sbr.rel (0) target = $region5
    $region4: #{tpu_custom_call.1} parent=1 // pred_region
      %s16 = ssub.s32 128, 128
      %17 = vsyncadd [#allocation4], %s16
      %s18 = sshll.u32 [#allocation3], 4
      %s19 = int_to_ptr.vmem [resolvable:$true] %s18
      %24 = dma.hbm_to_vmem [thread:$0]  %s0, 128, %s19, [#allocation4], 64, 64, 4
    $region5: #{tpu_custom_call.1} parent=1 // pred_fallthru
      _
    // Predicated region
    $region6: #{tpu_custom_call.1} parent=1 // pred_check
      _
    $region7: #{tpu_custom_call.1} parent=1 // pred_check_branch
      %26 = sbr.rel (0) target = $region9
    $region8: #{tpu_custom_call.1} parent=1 // pred_region
      %s28 = ssub.s32 2048, 2048
      %29 = vsyncadd [#allocation7], %s28
      %s30 = sshll.u32 [#allocation6], 4
      %s31 = int_to_ptr.vmem [resolvable:$true] %s30
      %36 = dma.hbm_to_vmem [thread:$0]  %s1, 2048, %s31, [#allocation7], 128, 128, 8
    $region9: #{tpu_custom_call.1} parent=1 // pred_fallthru
      _
    // Predicated region
    $region10: #{tpu_custom_call.1} parent=1 // pred_check
      _
    $region11: #{tpu_custom_call.1} parent=1 // pred_check_branch
      %38 = sbr.rel (0) target = $region13
    $region12: #{tpu_custom_call.1} parent=1 // pred_region
      %s40 = ssub.s32 2048, 2048
      %41 = vsyncadd [#allocation7], %s40
      %s42 = sshll.u32 [#allocation8], 4
      %s43 = int_to_ptr.vmem [resolvable:$true] %s42
      %48 = dma.hbm_to_vmem [thread:$0]  %s2, 2048, %s43, [#allocation7], 128, 128, 8
    $region13: #{tpu_custom_call.1} parent=1 // pred_fallthru
      _
    // Predicated region
    $region14: #{tpu_custom_call.1} parent=1 // pred_check
      _
    $region15: #{tpu_custom_call.1} parent=1 // pred_check_branch
      %50 = sbr.rel (0) target = $region17
    $region16: #{tpu_custom_call.1} parent=1 // pred_region
      %s52 = ssub.s32 2048, 2048
      %53 = vsyncadd [#allocation10], %s52
      %s54 = sshll.u32 [#allocation9], 4
      %s55 = int_to_ptr.vmem [resolvable:$true] %s54
      %60 = dma.hbm_to_vmem [thread:$0]  %s3, 2048, %s55, [#allocation10], 64, 64, 4
    $region17: #{tpu_custom_call.1} parent=1 // pred_fallthru
      _
    // Predicated region
    $region18: #{tpu_custom_call.1} parent=1 // pred_check
      _
    $region19: #{tpu_custom_call.1} parent=1 // pred_check_branch
      %62 = sbr.rel (0) target = $region21
    $region20: #{tpu_custom_call.1} parent=1 // pred_region
      %63 = dma.done [#allocation4], 128
    $region21: #{tpu_custom_call.1} parent=1 // pred_fallthru
      _
    // Predicated region
    $region22: #{tpu_custom_call.1} parent=1 // pred_check
      _
    $region23: #{tpu_custom_call.1} parent=1 // pred_check_branch
      %65 = sbr.rel (0) target = $region25
    $region24: #{tpu_custom_call.1} parent=1 // pred_region
      %66 = dma.done [#allocation7], 2048
    $region25: #{tpu_custom_call.1} parent=1 // pred_fallthru
      _
    // Predicated region
    $region26: #{tpu_custom_call.1} parent=1 // pred_check
      _
    $region27: #{tpu_custom_call.1} parent=1 // pred_check_branch
      %68 = sbr.rel (0) target = $region29
    $region28: #{tpu_custom_call.1} parent=1 // pred_region
      %69 = dma.done [#allocation7], 2048
    $region29: #{tpu_custom_call.1} parent=1 // pred_fallthru
      _
    // Predicated region
    $region30: #{tpu_custom_call.1} parent=1 // pred_check
      _
    $region31: #{tpu_custom_call.1} parent=1 // pred_check_branch
      %71 = sbr.rel (0) target = $region33
    $region32: #{tpu_custom_call.1} parent=1 // pred_region
      %72 = dma.done [#allocation10], 2048
    $region33: #{tpu_custom_call.1} parent=1 // pred_fallthru
      _
    %p74 = scmp.eq.s32.totalorder 0, 0
    // Predicated region
    $region34: #{tpu_custom_call.1} parent=1 // pred_check
      %p75 = pneg %p74
    $region35: #{tpu_custom_call.1} parent=1 // pred_check_branch
      %77 = sbr.rel (%p75) target = $region37
    $region36: #{tpu_custom_call.1} parent=1 // pred_region
      %78 = vst [vmem:[#allocation2] sm:$0xff] 0.0
      %79 = vst [vmem:[#allocation2 + $0x8] sm:$0xff] 0.0
    $region37: #{tpu_custom_call.1} parent=1 // pred_fallthru
      _
    %v80 = vld [vmem:[#allocation3] sm:$0xf]
    %v81 = vld [vmem:[#allocation3 + $0x4] sm:$0xf]
    %v82 = vld [vmem:[#allocation6] sm:$0xff]
    %v83 = vld [vmem:[#allocation6 + $0x8] sm:$0xff]
    %v84 = vld [vmem:[#allocation6 + $0x10] sm:$0xff]
    %v85 = vld [vmem:[#allocation6 + $0x18] sm:$0xff]
    %v86 = vld [vmem:[#allocation6 + $0x20] sm:$0xff]
    %v87 = vld [vmem:[#allocation6 + $0x28] sm:$0xff]
    %v88 = vld [vmem:[#allocation6 + $0x30] sm:$0xff]
    %v89 = vld [vmem:[#allocation6 + $0x38] sm:$0xff]
    %v90 = vld [vmem:[#allocation6 + $0x40] sm:$0xff]
    %v91 = vld [vmem:[#allocation6 + $0x48] sm:$0xff]
    %v92 = vld [vmem:[#allocation6 + $0x50] sm:$0xff]
    %v93 = vld [vmem:[#allocation6 + $0x58] sm:$0xff]
    %v94 = vld [vmem:[#allocation6 + $0x60] sm:$0xff]
    %v95 = vld [vmem:[#allocation6 + $0x68] sm:$0xff]
    %v96 = vld [vmem:[#allocation6 + $0x70] sm:$0xff]
    %v97 = vld [vmem:[#allocation6 + $0x78] sm:$0xff]
    %v100 = vunpack.c.l.b16 %v80
    %v101 = vunpack.c.l.b16 %v81
    %v102 = vpack.c.b16 %v101, %v100
    %v120 = vunpack.c.l.b16 %v82
    %v121 = vunpack.c.h.b16 %v82
    %v122 = vunpack.c.l.b16 %v83
    %v123 = vunpack.c.h.b16 %v83
    %v124 = vunpack.c.l.b16 %v84
    %v125 = vunpack.c.h.b16 %v84
    %v126 = vunpack.c.l.b16 %v85
    %v127 = vunpack.c.h.b16 %v85
    %v128 = vunpack.c.l.b16 %v86
    %v129 = vunpack.c.h.b16 %v86
    %v130 = vunpack.c.l.b16 %v87
    %v131 = vunpack.c.h.b16 %v87
    %v132 = vunpack.c.l.b16 %v88
    %v133 = vunpack.c.h.b16 %v88
    %v134 = vunpack.c.l.b16 %v89
    %v135 = vunpack.c.h.b16 %v89
    %v136 = vunpack.c.l.b16 %v90
    %v137 = vunpack.c.h.b16 %v90
    %v138 = vunpack.c.l.b16 %v91
    %v139 = vunpack.c.h.b16 %v91
    %v140 = vunpack.c.l.b16 %v92
    %v141 = vunpack.c.h.b16 %v92
    %v142 = vunpack.c.l.b16 %v93
    %v143 = vunpack.c.h.b16 %v93
    %v144 = vunpack.c.l.b16 %v94
    %v145 = vunpack.c.h.b16 %v94
    %v146 = vunpack.c.l.b16 %v95
    %v147 = vunpack.c.h.b16 %v95
    %v148 = vunpack.c.l.b16 %v96
    %v149 = vunpack.c.h.b16 %v96
    %v150 = vunpack.c.l.b16 %v97
    %v151 = vunpack.c.h.b16 %v97
    %v152 = vpack.c.b16 %v122, %v120
    %v153 = vpack.c.b16 %v123, %v121
    %v154 = vpack.c.b16 %v126, %v124
    %v155 = vpack.c.b16 %v127, %v125
    %v156 = vpack.c.b16 %v130, %v128
    %v157 = vpack.c.b16 %v131, %v129
    %v158 = vpack.c.b16 %v134, %v132
    %v159 = vpack.c.b16 %v135, %v133
    %v160 = vpack.c.b16 %v138, %v136
    %v161 = vpack.c.b16 %v139, %v137
    %v162 = vpack.c.b16 %v142, %v140
    %v163 = vpack.c.b16 %v143, %v141
    %v164 = vpack.c.b16 %v146, %v144
    %v165 = vpack.c.b16 %v147, %v145
    %v166 = vpack.c.b16 %v150, %v148
    %v167 = vpack.c.b16 %v151, %v149
    %184 = vmatprep.subr.bf16.mxu0 %v153
    %185 = vmatpush1.bf16.msra.mxu0 %v152
    %186 = vmatprep.subr.bf16.mxu0 %v155
    %187 = vmatpush1.bf16.msra.mxu0 %v154
    %188 = vmatprep.subr.bf16.mxu0 %v157
    %189 = vmatpush1.bf16.msra.mxu0 %v156
    %190 = vmatprep.subr.bf16.mxu0 %v159
    %191 = vmatpush1.bf16.msra.mxu0 %v158
    %192 = vmatprep.subr.bf16.mxu0 %v161
    %193 = vmatpush1.bf16.msra.mxu0 %v160
    %194 = vmatprep.subr.bf16.mxu0 %v163
    %195 = vmatpush1.bf16.msra.mxu0 %v162
    %196 = vmatprep.subr.bf16.mxu0 %v165
    %197 = vmatpush1.bf16.msra.mxu0 %v164
    %198 = vmatprep.subr.bf16.mxu0 %v167
    %199 = vmatpush1.bf16.msra.mxu0 %v166
    %200 = vmatprep.subr.bf16.mxu0 0
    %201 = vmatpush1.bf16.msra.mxu0 0
    %202 = vmatprep.subr.bf16.mxu0 0
    %203 = vmatpush1.bf16.msra.mxu0 0
    %204 = vmatprep.subr.bf16.mxu0 0
    %205 = vmatpush1.bf16.msra.mxu0 0
    %206 = vmatprep.subr.bf16.mxu0 0
    %207 = vmatpush1.bf16.msra.mxu0 0
    %208 = vmatprep.subr.bf16.mxu0 0
    %209 = vmatpush1.bf16.msra.mxu0 0
    %210 = vmatprep.subr.bf16.mxu0 0
    %211 = vmatpush1.bf16.msra.mxu0 0
    %212 = vmatprep.subr.bf16.mxu0 0
    %213 = vmatpush1.bf16.msra.mxu0 0
    %214 = vmatprep.subr.bf16.mxu0 0
    %215 = vmatpush1.bf16.msra.mxu0 0
    %216 = vmatprep.mubr.bf16.mxu0 0
    %217 = vmatmul.mubr.bf16.gmra.mrb[0].mxu0 %v102
    %v218 = vpop.f32.mrb[0].mxu0
    %v219 = vadd.f32 0.0, %v218
    %v220 = vpop.f32.mrb[0].mxu0
    %v221 = vadd.f32 0.0, %v220
    %v222 = vpop.f32.mrb[0].mxu0
    %v223 = vadd.f32 0.0, %v222
    %v224 = vpop.f32.mrb[0].mxu0
    %v225 = vadd.f32 0.0, %v224
    %226 = vdwg.mxu0
    %v227 = vld [vmem:[#allocation8] sm:$0xff]
    %v228 = vld [vmem:[#allocation8 + $0x8] sm:$0xff]
    %v229 = vld [vmem:[#allocation8 + $0x10] sm:$0xff]
    %v230 = vld [vmem:[#allocation8 + $0x18] sm:$0xff]
    %v231 = vld [vmem:[#allocation8 + $0x20] sm:$0xff]
    %v232 = vld [vmem:[#allocation8 + $0x28] sm:$0xff]
    %v233 = vld [vmem:[#allocation8 + $0x30] sm:$0xff]
    %v234 = vld [vmem:[#allocation8 + $0x38] sm:$0xff]
    %v235 = vld [vmem:[#allocation8 + $0x40] sm:$0xff]
    %v236 = vld [vmem:[#allocation8 + $0x48] sm:$0xff]
    %v237 = vld [vmem:[#allocation8 + $0x50] sm:$0xff]
    %v238 = vld [vmem:[#allocation8 + $0x58] sm:$0xff]
    %v239 = vld [vmem:[#allocation8 + $0x60] sm:$0xff]
    %v240 = vld [vmem:[#allocation8 + $0x68] sm:$0xff]
    %v241 = vld [vmem:[#allocation8 + $0x70] sm:$0xff]
    %v242 = vld [vmem:[#allocation8 + $0x78] sm:$0xff]
    %v259 = vunpack.c.l.b16 %v227
    %v260 = vunpack.c.h.b16 %v227
    %v261 = vunpack.c.l.b16 %v228
    %v262 = vunpack.c.h.b16 %v228
    %v263 = vunpack.c.l.b16 %v229
    %v264 = vunpack.c.h.b16 %v229
    %v265 = vunpack.c.l.b16 %v230
    %v266 = vunpack.c.h.b16 %v230
    %v267 = vunpack.c.l.b16 %v231
    %v268 = vunpack.c.h.b16 %v231
    %v269 = vunpack.c.l.b16 %v232
    %v270 = vunpack.c.h.b16 %v232
    %v271 = vunpack.c.l.b16 %v233
    %v272 = vunpack.c.h.b16 %v233
    %v273 = vunpack.c.l.b16 %v234
    %v274 = vunpack.c.h.b16 %v234
    %v275 = vunpack.c.l.b16 %v235
    %v276 = vunpack.c.h.b16 %v235
    %v277 = vunpack.c.l.b16 %v236
    %v278 = vunpack.c.h.b16 %v236
    %v279 = vunpack.c.l.b16 %v237
    %v280 = vunpack.c.h.b16 %v237
    %v281 = vunpack.c.l.b16 %v238
    %v282 = vunpack.c.h.b16 %v238
    %v283 = vunpack.c.l.b16 %v239
    %v284 = vunpack.c.h.b16 %v239
    %v285 = vunpack.c.l.b16 %v240
    %v286 = vunpack.c.h.b16 %v240
    %v287 = vunpack.c.l.b16 %v241
    %v288 = vunpack.c.h.b16 %v241
    %v289 = vunpack.c.l.b16 %v242
    %v290 = vunpack.c.h.b16 %v242
    %v291 = vpack.c.b16 %v261, %v259
    %v292 = vpack.c.b16 %v262, %v260
    %v293 = vpack.c.b16 %v265, %v263
    %v294 = vpack.c.b16 %v266, %v264
    %v295 = vpack.c.b16 %v269, %v267
    %v296 = vpack.c.b16 %v270, %v268
    %v297 = vpack.c.b16 %v273, %v271
    %v298 = vpack.c.b16 %v274, %v272
    %v299 = vpack.c.b16 %v277, %v275
    %v300 = vpack.c.b16 %v278, %v276
    %v301 = vpack.c.b16 %v281, %v279
    %v302 = vpack.c.b16 %v282, %v280
    %v303 = vpack.c.b16 %v285, %v283
    %v304 = vpack.c.b16 %v286, %v284
    %v305 = vpack.c.b16 %v289, %v287
    %v306 = vpack.c.b16 %v290, %v288
    %323 = vmatprep.subr.bf16.mxu0 %v292
    %324 = vmatpush1.bf16.msra.mxu0 %v291
    %325 = vmatprep.subr.bf16.mxu0 %v294
    %326 = vmatpush1.bf16.msra.mxu0 %v293
    %327 = vmatprep.subr.bf16.mxu0 %v296
    %328 = vmatpush1.bf16.msra.mxu0 %v295
    %329 = vmatprep.subr.bf16.mxu0 %v298
    %330 = vmatpush1.bf16.msra.mxu0 %v297
    %331 = vmatprep.subr.bf16.mxu0 %v300
    %332 = vmatpush1.bf16.msra.mxu0 %v299
    %333 = vmatprep.subr.bf16.mxu0 %v302
    %334 = vmatpush1.bf16.msra.mxu0 %v301
    %335 = vmatprep.subr.bf16.mxu0 %v304
    %336 = vmatpush1.bf16.msra.mxu0 %v303
    %337 = vmatprep.subr.bf16.mxu0 %v306
    %338 = vmatpush1.bf16.msra.mxu0 %v305
    %339 = vmatprep.subr.bf16.mxu0 0
    %340 = vmatpush1.bf16.msra.mxu0 0
    %341 = vmatprep.subr.bf16.mxu0 0
    %342 = vmatpush1.bf16.msra.mxu0 0
    %343 = vmatprep.subr.bf16.mxu0 0
    %344 = vmatpush1.bf16.msra.mxu0 0
    %345 = vmatprep.subr.bf16.mxu0 0
    %346 = vmatpush1.bf16.msra.mxu0 0
    %347 = vmatprep.subr.bf16.mxu0 0
    %348 = vmatpush1.bf16.msra.mxu0 0
    %349 = vmatprep.subr.bf16.mxu0 0
    %350 = vmatpush1.bf16.msra.mxu0 0
    %351 = vmatprep.subr.bf16.mxu0 0
    %352 = vmatpush1.bf16.msra.mxu0 0
    %353 = vmatprep.subr.bf16.mxu0 0
    %354 = vmatpush1.bf16.msra.mxu0 0
    %355 = vmatprep.mubr.bf16.mxu0 0
    %356 = vmatmul.mubr.bf16.gmra.mrb[0].mxu0 %v102
    %v357 = vpop.f32.mrb[0].mxu0
    %v358 = vadd.f32 0.0, %v357
    %v359 = vpop.f32.mrb[0].mxu0
    %v360 = vadd.f32 0.0, %v359
    %v361 = vpop.f32.mrb[0].mxu0
    %v362 = vadd.f32 0.0, %v361
    %v363 = vpop.f32.mrb[0].mxu0
    %v364 = vadd.f32 0.0, %v363
    %365 = vdwg.mxu0
    %v366 = vxor.u32 %v219, 2147483648
    %v367 = vxor.u32 %v221, 2147483648
    %v368 = vxor.u32 %v223, 2147483648
    %v369 = vxor.u32 %v225, 2147483648
    %v370 = vmul.f32 %v366, 1.442695
    %v371 = vpow.pop %v370
    %v372 = vmul.f32 %v367, 1.442695
    %v373 = vpow.pop %v372
    %v374 = vmul.f32 %v368, 1.442695
    %v375 = vpow.pop %v374
    %v376 = vmul.f32 %v369, 1.442695
    %v377 = vpow.pop %v376
    %v378 = vadd.f32 %v371, 1.0
    %v379 = vadd.f32 %v373, 1.0
    %v380 = vadd.f32 %v375, 1.0
    %v381 = vadd.f32 %v377, 1.0
    %v382 = vrcp.pop %v378
    %v383 = vmul.f32 1.0, %v382
    %v384 = vrcp.pop %v379
    %v385 = vmul.f32 1.0, %v384
    %v386 = vrcp.pop %v380
    %v387 = vmul.f32 1.0, %v386
    %v388 = vrcp.pop %v381
    %v389 = vmul.f32 1.0, %v388
    %v390 = vmul.f32 %v219, %v383
    %v391 = vmul.f32 %v221, %v385
    %v392 = vmul.f32 %v223, %v387
    %v393 = vmul.f32 %v225, %v389
    %v394 = vmul.f32 %v390, %v358
    %v395 = vmul.f32 %v391, %v360
    %v396 = vmul.f32 %v392, %v362
    %v397 = vmul.f32 %v393, %v364
    %v398 = vld [vmem:[#allocation2] sm:$0xff]
    %v399 = vld [vmem:[#allocation2 + $0x8] sm:$0xff]
    %v400 = vpack.c.bf16 %v396, %v394
    %v401 = vpack.c.bf16 %v397, %v395
    %v402 = vld [vmem:[#allocation9] sm:$0xf]
    %v403 = vld [vmem:[#allocation9 + $0x4] sm:$0xf]
    %v404 = vld [vmem:[#allocation9 + $0x8] sm:$0xf]
    %v405 = vld [vmem:[#allocation9 + $0xc] sm:$0xf]
    %v406 = vld [vmem:[#allocation9 + $0x10] sm:$0xf]
    %v407 = vld [vmem:[#allocation9 + $0x14] sm:$0xf]
    %v408 = vld [vmem:[#allocation9 + $0x18] sm:$0xf]
    %v409 = vld [vmem:[#allocation9 + $0x1c] sm:$0xf]
    %v410 = vld [vmem:[#allocation9 + $0x20] sm:$0xf]
    %v411 = vld [vmem:[#allocation9 + $0x24] sm:$0xf]
    %v412 = vld [vmem:[#allocation9 + $0x28] sm:$0xf]
    %v413 = vld [vmem:[#allocation9 + $0x2c] sm:$0xf]
    %v414 = vld [vmem:[#allocation9 + $0x30] sm:$0xf]
    %v415 = vld [vmem:[#allocation9 + $0x34] sm:$0xf]
    %v416 = vld [vmem:[#allocation9 + $0x38] sm:$0xf]
    %v417 = vld [vmem:[#allocation9 + $0x3c] sm:$0xf]
    %v418 = vld [vmem:[#allocation9 + $0x40] sm:$0xf]
    %v419 = vld [vmem:[#allocation9 + $0x44] sm:$0xf]
    %v420 = vld [vmem:[#allocation9 + $0x48] sm:$0xf]
    %v421 = vld [vmem:[#allocation9 + $0x4c] sm:$0xf]
    %v422 = vld [vmem:[#allocation9 + $0x50] sm:$0xf]
    %v423 = vld [vmem:[#allocation9 + $0x54] sm:$0xf]
    %v424 = vld [vmem:[#allocation9 + $0x58] sm:$0xf]
    %v425 = vld [vmem:[#allocation9 + $0x5c] sm:$0xf]
    %v426 = vld [vmem:[#allocation9 + $0x60] sm:$0xf]
    %v427 = vld [vmem:[#allocation9 + $0x64] sm:$0xf]
    %v428 = vld [vmem:[#allocation9 + $0x68] sm:$0xf]
    %v429 = vld [vmem:[#allocation9 + $0x6c] sm:$0xf]
    %v430 = vld [vmem:[#allocation9 + $0x70] sm:$0xf]
    %v431 = vld [vmem:[#allocation9 + $0x74] sm:$0xf]
    %v432 = vld [vmem:[#allocation9 + $0x78] sm:$0xf]
    %v433 = vld [vmem:[#allocation9 + $0x7c] sm:$0xf]
    %v466 = vunpack.c.l.b16 %v402
    %v467 = vunpack.c.l.b16 %v403
    %v468 = vunpack.c.l.b16 %v404
    %v469 = vunpack.c.l.b16 %v405
    %v470 = vunpack.c.l.b16 %v406
    %v471 = vunpack.c.l.b16 %v407
    %v472 = vunpack.c.l.b16 %v408
    %v473 = vunpack.c.l.b16 %v409
    %v474 = vunpack.c.l.b16 %v410
    %v475 = vunpack.c.l.b16 %v411
    %v476 = vunpack.c.l.b16 %v412
    %v477 = vunpack.c.l.b16 %v413
    %v478 = vunpack.c.l.b16 %v414
    %v479 = vunpack.c.l.b16 %v415
    %v480 = vunpack.c.l.b16 %v416
    %v481 = vunpack.c.l.b16 %v417
    %v482 = vunpack.c.l.b16 %v418
    %v483 = vunpack.c.l.b16 %v419
    %v484 = vunpack.c.l.b16 %v420
    %v485 = vunpack.c.l.b16 %v421
    %v486 = vunpack.c.l.b16 %v422
    %v487 = vunpack.c.l.b16 %v423
    %v488 = vunpack.c.l.b16 %v424
    %v489 = vunpack.c.l.b16 %v425
    %v490 = vunpack.c.l.b16 %v426
    %v491 = vunpack.c.l.b16 %v427
    %v492 = vunpack.c.l.b16 %v428
    %v493 = vunpack.c.l.b16 %v429
    %v494 = vunpack.c.l.b16 %v430
    %v495 = vunpack.c.l.b16 %v431
    %v496 = vunpack.c.l.b16 %v432
    %v497 = vunpack.c.l.b16 %v433
    %v498 = vpack.c.b16 %v467, %v466
    %v499 = vpack.c.b16 %v469, %v468
    %v500 = vpack.c.b16 %v471, %v470
    %v501 = vpack.c.b16 %v473, %v472
    %v502 = vpack.c.b16 %v475, %v474
    %v503 = vpack.c.b16 %v477, %v476
    %v504 = vpack.c.b16 %v479, %v478
    %v505 = vpack.c.b16 %v481, %v480
    %v506 = vpack.c.b16 %v483, %v482
    %v507 = vpack.c.b16 %v485, %v484
    %v508 = vpack.c.b16 %v487, %v486
    %v509 = vpack.c.b16 %v489, %v488
    %v510 = vpack.c.b16 %v491, %v490
    %v511 = vpack.c.b16 %v493, %v492
    %v512 = vpack.c.b16 %v495, %v494
    %v513 = vpack.c.b16 %v497, %v496
    %530 = vmatprep.subr.bf16.mxu0 0
    %531 = vmatpush1.bf16.msra.mxu0 %v498
    %532 = vmatprep.subr.bf16.mxu0 0
    %533 = vmatpush1.bf16.msra.mxu0 %v499
    %534 = vmatprep.subr.bf16.mxu0 0
    %535 = vmatpush1.bf16.msra.mxu0 %v500
    %536 = vmatprep.subr.bf16.mxu0 0
    %537 = vmatpush1.bf16.msra.mxu0 %v501
    %538 = vmatprep.subr.bf16.mxu0 0
    %539 = vmatpush1.bf16.msra.mxu0 %v502
    %540 = vmatprep.subr.bf16.mxu0 0
    %541 = vmatpush1.bf16.msra.mxu0 %v503
    %542 = vmatprep.subr.bf16.mxu0 0
    %543 = vmatpush1.bf16.msra.mxu0 %v504
    %544 = vmatprep.subr.bf16.mxu0 0
    %545 = vmatpush1.bf16.msra.mxu0 %v505
    %546 = vmatprep.subr.bf16.mxu0 0
    %547 = vmatpush1.bf16.msra.mxu0 %v506
    %548 = vmatprep.subr.bf16.mxu0 0
    %549 = vmatpush1.bf16.msra.mxu0 %v507
    %550 = vmatprep.subr.bf16.mxu0 0
    %551 = vmatpush1.bf16.msra.mxu0 %v508
    %552 = vmatprep.subr.bf16.mxu0 0
    %553 = vmatpush1.bf16.msra.mxu0 %v509
    %554 = vmatprep.subr.bf16.mxu0 0
    %555 = vmatpush1.bf16.msra.mxu0 %v510
    %556 = vmatprep.subr.bf16.mxu0 0
    %557 = vmatpush1.bf16.msra.mxu0 %v511
    %558 = vmatprep.subr.bf16.mxu0 0
    %559 = vmatpush1.bf16.msra.mxu0 %v512
    %560 = vmatprep.subr.bf16.mxu0 0
    %561 = vmatpush1.bf16.msra.mxu0 %v513
    %562 = vmatprep.mubr.bf16.mxu0 %v401
    %563 = vmatmul.mubr.bf16.gmra.mrb[0].mxu0 %v400
    %v564 = vpop.f32.mrb[0].mxu0
    %v565 = vadd.f32 0.0, %v564
    %v566 = vpop.f32.mrb[0].mxu0
    %v567 = vpop.f32.mrb[0].mxu0
    %v568 = vadd.f32 0.0, %v567
    %v569 = vpop.f32.mrb[0].mxu0
    %570 = vdwg.mxu0
    %v571 = vadd.f32 %v398, %v565
    %v572 = vadd.f32 %v399, %v568
    %573 = vst [vmem:[#allocation2] sm:$0xff] %v571
    %574 = vst [vmem:[#allocation2 + $0x8] sm:$0xff] %v572
    // Predicated region
    $region38: #{tpu_custom_call.1} parent=1 // pred_check
      %p575 = pneg %p74
    $region39: #{tpu_custom_call.1} parent=1 // pred_check_branch
      %577 = sbr.rel (%p575) target = $region41
    $region40: #{tpu_custom_call.1} parent=1 // pred_region
      %v578 = vld [vmem:[#allocation2] sm:$0xff]
      %v579 = vld [vmem:[#allocation2 + $0x8] sm:$0xff]
      %v580 = vpack.c.bf16 %v579, %v578
      %v582 = vunpack.c.l.b16 %v580
      %v583 = vunpack.c.h.b16 %v580
      %v584 = vpack.c.b16 %v582, %v582
      %v585 = vpack.c.b16 %v583, %v583
      %588 = vst [vmem:[#allocation11] sm:$0xf] %v584
      %589 = vst [vmem:[#allocation11 + $0x4] sm:$0xf] %v585
    $region41: #{tpu_custom_call.1} parent=1 // pred_fallthru
      _
    // Predicated region
    $region42: #{tpu_custom_call.1} parent=1 // pred_check
      _
    $region43: #{tpu_custom_call.1} parent=1 // pred_check_branch
      %591 = sbr.rel (0) target = $region45
    $region44: #{tpu_custom_call.1} parent=1 // pred_region
      %s593 = ssub.s32 128, 128
      %594 = vsyncadd [#allocation5], %s593
      %s595 = sshll.u32 [#allocation11], 4
      %s596 = int_to_ptr.vmem [resolvable:$true] %s595
      %601 = dma.vmem_to_hbm [thread:$0]  %s596, 128, %s4, [#allocation5], 64, 64, 4
    $region45: #{tpu_custom_call.1} parent=1 // pred_fallthru
      _
    // Predicated region
    $region46: #{tpu_custom_call.1} parent=1 // pred_check
      _
    $region47: #{tpu_custom_call.1} parent=1 // pred_check_branch
      %603 = sbr.rel (0) target = $region49
    $region48: #{tpu_custom_call.1} parent=1 // pred_region
      %604 = dma.done [#allocation5], 128
    $region49: #{tpu_custom_call.1} parent=1 // pred_fallthru
      _
    %605 = vsyncpa [#allocation4], 1
    %606 = vsyncpa [#allocation7], 1
    %607 = vsyncpa [#allocation10], 1
    %608 = vsyncpa [#allocation5], 1

</llo_original>
